<compile_context>
chip_gen: v5e
topology: v5e:2x2
jax: 0.10.0
libtpu: 0.0.40
codegen_flags: <defaults>
</compile_context>

<pallas_src>
import jax
import jax.numpy as jnp
from jax.experimental import pallas as pl
from jax.experimental.pallas import tpu as pltpu

_SUBLANE = 8


def _round_up(x: int, m: int) -> int:
    return (x + m - 1) // m * m


def _policy_kernel(x_ref, w1_ref, b1_ref, w2_ref, b2_ref, w3_ref, b3_ref, o_ref):
    # Layer 1 (f32 matmul, f32 accumulate) + bias + ReLU.
    h = jnp.dot(x_ref[...], w1_ref[...], preferred_element_type=jnp.float32)
    h = jnp.maximum(h + b1_ref[...], 0.0)
    # Layer 2.
    h = jnp.dot(h, w2_ref[...], preferred_element_type=jnp.float32)
    h = jnp.maximum(h + b2_ref[...], 0.0)
    # Output layer + Tanh (EUP slot; hidden behind MXU/DMA).
    h = jnp.dot(h, w3_ref[...], preferred_element_type=jnp.float32)
    o_ref[...] = jnp.tanh(h + b3_ref[...]).astype(o_ref.dtype)


def deterministic_policy_forward(obs, params, *, tile_b: int = 2048):
    """obs: [B, state_dim] float32; params: dict of f32 weights/biases.

    Weights are stored [in_features, out_features] (y = x @ W + b, i.e. the
    transpose of PyTorch's nn.Linear storage); biases are [1, out_features].
    """
    w1, b1 = params["w1"], params["b1"]
    w2, b2 = params["w2"], params["b2"]
    w3, b3 = params["w3"], params["b3"]

    batch, state_dim = obs.shape
    hidden_dim = w1.shape[1]
    act_dim = w3.shape[1]

    # Batch tiling: 8-aligned tile, capped at ~batch/2 so grid >= 2 whenever
    # the batch allows it (keeps both v7x TensorCores busy).  No padding of
    # the ragged tail: Pallas handles the partial last block.
    tile_b = max(_SUBLANE, min(_round_up(tile_b, _SUBLANE),
                               _round_up(pl.cdiv(batch, 2), _SUBLANE)))
    grid = (pl.cdiv(batch, tile_b),)

    def resident(shape):
        # Full-array block, same block index every grid step -> DMA'd once,
        # stays VMEM-resident for the whole grid.
        return pl.BlockSpec(shape, lambda i: (0, 0))

    flops = 2 * batch * (state_dim * hidden_dim
                         + hidden_dim * hidden_dim
                         + hidden_dim * act_dim)
    bytes_accessed = (obs.size * 4                                   # obs f32
                      + batch * act_dim * 4                          # out f32
                      + (w1.size + w2.size + w3.size) * 4            # weights
                      + (b1.size + b2.size + b3.size) * 4)           # biases
    cost = pl.CostEstimate(flops=flops,
                           transcendentals=batch * act_dim,
                           bytes_accessed=bytes_accessed)

    return pl.pallas_call(
        _policy_kernel,
        out_shape=jax.ShapeDtypeStruct((batch, act_dim), jnp.float32),
        grid=grid,
        in_specs=[
            pl.BlockSpec((tile_b, state_dim), lambda i: (i, 0)),   # obs tile
            resident(w1.shape), resident(b1.shape),
            resident(w2.shape), resident(b2.shape),
            resident(w3.shape), resident(b3.shape),
        ],
        out_specs=pl.BlockSpec((tile_b, act_dim), lambda i: (i, 0)),
        compiler_params=pltpu.CompilerParams(
            dimension_semantics=("parallel",),      # v7x: shard across 2 TCs
            vmem_limit_bytes=32 * 1024 * 1024,      # explicit, fits all gens
        ),
        cost_estimate=cost,
    )(obs, w1, b1, w2, b2, w3, b3)


def init_params(key, state_dim, hidden_dim, act_dim):
    """Deterministic synthetic parameters (shapes mirror nn.Linear layers)."""
    ks = jax.random.split(key, 6)

    def linear(kw, kb, fan_in, fan_out):
        bound = 1.0 / jnp.sqrt(fan_in)
        w = jax.random.uniform(kw, (fan_in, fan_out), jnp.float32, -bound, bound)
        b = jax.random.uniform(kb, (1, fan_out), jnp.float32, -bound, bound)
        return w, b

    w1, b1 = linear(ks[0], ks[1], state_dim, hidden_dim)
    w2, b2 = linear(ks[2], ks[3], hidden_dim, hidden_dim)
    w3, b3 = linear(ks[4], ks[5], hidden_dim, act_dim)
    return {"w1": w1, "b1": b1, "w2": w2, "b2": b2, "w3": w3, "b3": b3}


def _reference_f32(obs, params):
    h = jnp.maximum(obs @ params["w1"] + params["b1"], 0.0)
    h = jnp.maximum(h @ params["w2"] + params["b2"], 0.0)
    return jnp.tanh(h @ params["w3"] + params["b3"])


if __name__ == "__main__":
    # Small shapes consistent with DeterministicPolicy (n_hidden=2).
    state_dim, act_dim, hidden_dim = 8, 4, 32

    key = jax.random.PRNGKey(0)
    k_params, k_obs1, k_obs2 = jax.random.split(key, 3)
    params = init_params(k_params, state_dim, hidden_dim, act_dim)

    # Case 1: even batch -> grid=2, both TCs get a full tile.
    batch = 64
    obs = jax.random.normal(k_obs1, (batch, state_dim), dtype=jnp.float32)
    out = jax.block_until_ready(deterministic_policy_forward(obs, params))
    ref = _reference_f32(obs, params)
    assert out.shape == (batch, act_dim)
    assert jnp.allclose(out, ref, atol=1e-3, rtol=1e-3), "mismatch (batch=64)"

    # Case 2: ragged batch -> exercises the partial final block path.
    batch2 = 53
    obs2 = jax.random.normal(k_obs2, (batch2, state_dim), dtype=jnp.float32)
    out2 = jax.block_until_ready(deterministic_policy_forward(obs2, params))
    ref2 = _reference_f32(obs2, params)
    assert out2.shape == (batch2, act_dim)
    assert jnp.allclose(out2, ref2, atol=1e-3, rtol=1e-3), "mismatch (batch=53)"

    # TODO(synk): max_action scaling/clamp belongs to .act(), not forward().
    print("KERNEL_OK")
</pallas_src>

<mosaic_0001>
module attributes {stable_mosaic.version = 11 : i64} {
  func.func @_policy_kernel(%arg0: i32, %arg1: memref<32x8xf32, #tpu.memory_space<vmem>>, %arg2: memref<8x32xf32, #tpu.memory_space<vmem>>, %arg3: memref<1x32xf32, #tpu.memory_space<vmem>>, %arg4: memref<32x32xf32, #tpu.memory_space<vmem>>, %arg5: memref<1x32xf32, #tpu.memory_space<vmem>>, %arg6: memref<32x4xf32, #tpu.memory_space<vmem>>, %arg7: memref<1x4xf32, #tpu.memory_space<vmem>>, %arg8: memref<32x4xf32, #tpu.memory_space<vmem>>) attributes {dimension_semantics = [#tpu.dimension_semantics<parallel>], iteration_bounds = array<i64: 2>, scalar_prefetch = 0 : i64, scratch_operands = 0 : i64, tpu.core_type = #tpu.core_type<tc>, window_params = [{transform_indices = @transform_0, window_bounds = array<i64: 32, 8>}, {pipeline_mode = #tpu.pipeline_mode<synchronous>, transform_indices = @transform_1, window_bounds = array<i64: 8, 32>}, {pipeline_mode = #tpu.pipeline_mode<synchronous>, transform_indices = @transform_2, window_bounds = array<i64: 1, 32>}, {pipeline_mode = #tpu.pipeline_mode<synchronous>, transform_indices = @transform_3, window_bounds = array<i64: 32, 32>}, {pipeline_mode = #tpu.pipeline_mode<synchronous>, transform_indices = @transform_4, window_bounds = array<i64: 1, 32>}, {pipeline_mode = #tpu.pipeline_mode<synchronous>, transform_indices = @transform_5, window_bounds = array<i64: 32, 4>}, {pipeline_mode = #tpu.pipeline_mode<synchronous>, transform_indices = @transform_6, window_bounds = array<i64: 1, 4>}, {transform_indices = @transform_7, window_bounds = array<i64: 32, 4>}]} {
    %c0 = arith.constant 0 : index
    %c0_0 = arith.constant 0 : index
    %0 = vector.load %arg1[%c0, %c0_0] : memref<32x8xf32, #tpu.memory_space<vmem>>, vector<32x8xf32>
    %c0_1 = arith.constant 0 : index
    %c0_2 = arith.constant 0 : index
    %1 = vector.load %arg2[%c0_1, %c0_2] : memref<8x32xf32, #tpu.memory_space<vmem>>, vector<8x32xf32>
    %cst = arith.constant dense<0.000000e+00> : vector<32x32xf32>
    %2 = tpu.matmul %0, %1, %cst {dimension_numbers = #tpu.dot_dimension_numbers<[1], [0], [0], [1], [0, 0, 1, 1], [], []>} : vector<32x8xf32>, vector<8x32xf32>, vector<32x32xf32> -> vector<32x32xf32>
    %c0_3 = arith.constant 0 : index
    %c0_4 = arith.constant 0 : index
    %3 = vector.load %arg3[%c0_3, %c0_4] : memref<1x32xf32, #tpu.memory_space<vmem>>, vector<1x32xf32>
    %4 = vector.broadcast %3 : vector<1x32xf32> to vector<32x32xf32>
    %5 = arith.addf %2, %4 : vector<32x32xf32>
    %cst_5 = arith.constant 0.000000e+00 : f32
    %6 = vector.broadcast %cst_5 : f32 to vector<32x32xf32>
    %7 = arith.maximumf %5, %6 : vector<32x32xf32>
    %c0_6 = arith.constant 0 : index
    %c0_7 = arith.constant 0 : index
    %8 = vector.load %arg4[%c0_6, %c0_7] : memref<32x32xf32, #tpu.memory_space<vmem>>, vector<32x32xf32>
    %cst_8 = arith.constant dense<0.000000e+00> : vector<32x32xf32>
    %9 = tpu.matmul %7, %8, %cst_8 {dimension_numbers = #tpu.dot_dimension_numbers<[1], [0], [0], [1], [0, 0, 1, 1], [], []>} : vector<32x32xf32>, vector<32x32xf32>, vector<32x32xf32> -> vector<32x32xf32>
    %c0_9 = arith.constant 0 : index
    %c0_10 = arith.constant 0 : index
    %10 = vector.load %arg5[%c0_9, %c0_10] : memref<1x32xf32, #tpu.memory_space<vmem>>, vector<1x32xf32>
    %11 = vector.broadcast %10 : vector<1x32xf32> to vector<32x32xf32>
    %12 = arith.addf %9, %11 : vector<32x32xf32>
    %cst_11 = arith.constant 0.000000e+00 : f32
    %13 = vector.broadcast %cst_11 : f32 to vector<32x32xf32>
    %14 = arith.maximumf %12, %13 : vector<32x32xf32>
    %c0_12 = arith.constant 0 : index
    %c0_13 = arith.constant 0 : index
    %15 = vector.load %arg6[%c0_12, %c0_13] : memref<32x4xf32, #tpu.memory_space<vmem>>, vector<32x4xf32>
    %cst_14 = arith.constant dense<0.000000e+00> : vector<32x4xf32>
    %16 = tpu.matmul %14, %15, %cst_14 {dimension_numbers = #tpu.dot_dimension_numbers<[1], [0], [0], [1], [0, 0, 1, 1], [], []>} : vector<32x32xf32>, vector<32x4xf32>, vector<32x4xf32> -> vector<32x4xf32>
    %c0_15 = arith.constant 0 : index
    %c0_16 = arith.constant 0 : index
    %17 = vector.load %arg7[%c0_15, %c0_16] : memref<1x4xf32, #tpu.memory_space<vmem>>, vector<1x4xf32>
    %18 = vector.broadcast %17 : vector<1x4xf32> to vector<32x4xf32>
    %19 = arith.addf %16, %18 : vector<32x4xf32>
    %20 = math.tanh %19 : vector<32x4xf32>
    %c0_17 = arith.constant 0 : index
    %c0_18 = arith.constant 0 : index
    %21 = vector.load %arg8[%c0_17, %c0_18] : memref<32x4xf32, #tpu.memory_space<vmem>>, vector<32x4xf32>
    tpu.vector_store %arg8[%c0_17, %c0_18], %20 {strides = array<i32>} : memref<32x4xf32, #tpu.memory_space<vmem>>, vector<32x4xf32>,
    return
  }
  func.func @transform_0(%arg0: i32) -> (i32, i32) {
    %c0_i32 = arith.constant 0 : i32
    %c0_i32_0 = arith.constant 0 : i32
    return %arg0, %c0_i32 : i32, i32
  }
  func.func @transform_1(%arg0: i32) -> (i32, i32) {
    %c0_i32 = arith.constant 0 : i32
    %c0_i32_0 = arith.constant 0 : i32
    %c0_i32_1 = arith.constant 0 : i32
    return %c0_i32, %c0_i32_0 : i32, i32
  }
  func.func @transform_2(%arg0: i32) -> (i32, i32) {
    %c0_i32 = arith.constant 0 : i32
    %c0_i32_0 = arith.constant 0 : i32
    %c0_i32_1 = arith.constant 0 : i32
    return %c0_i32, %c0_i32_0 : i32, i32
  }
  func.func @transform_3(%arg0: i32) -> (i32, i32) {
    %c0_i32 = arith.constant 0 : i32
    %c0_i32_0 = arith.constant 0 : i32
    %c0_i32_1 = arith.constant 0 : i32
    return %c0_i32, %c0_i32_0 : i32, i32
  }
  func.func @transform_4(%arg0: i32) -> (i32, i32) {
    %c0_i32 = arith.constant 0 : i32
    %c0_i32_0 = arith.constant 0 : i32
    %c0_i32_1 = arith.constant 0 : i32
    return %c0_i32, %c0_i32_0 : i32, i32
  }
  func.func @transform_5(%arg0: i32) -> (i32, i32) {
    %c0_i32 = arith.constant 0 : i32
    %c0_i32_0 = arith.constant 0 : i32
    %c0_i32_1 = arith.constant 0 : i32
    return %c0_i32, %c0_i32_0 : i32, i32
  }
  func.func @transform_6(%arg0: i32) -> (i32, i32) {
    %c0_i32 = arith.constant 0 : i32
    %c0_i32_0 = arith.constant 0 : i32
    %c0_i32_1 = arith.constant 0 : i32
    return %c0_i32, %c0_i32_0 : i32, i32
  }
  func.func @transform_7(%arg0: i32) -> (i32, i32) {
    %c0_i32 = arith.constant 0 : i32
    %c0_i32_0 = arith.constant 0 : i32
    return %arg0, %c0_i32 : i32, i32
  }
}

</mosaic_0001>

<llo_original>
// kernel: tpu_custom_call.1
$region0: #{tpu_custom_call.1}
  #allocation0 [shape = 'u32[]', space=smem, size = 0x4, offset = 0x4, fixed_abs, tag = 'smem constant byte address 0x4 - core index']
  #allocation1 [shape = 'u32[72,128]{1,0:T(1,128)}', space=vmem, size = 0x9000, scoped, tag = 'internal scratch']
  %s0 = inlined_call_operand.vmem [shape: f32[64,8], index: 0, kind: input, shape index: {}]
  %s1 = inlined_call_operand.vmem [shape: f32[8,32], index: 1, kind: input, shape index: {}]
  %s2 = inlined_call_operand.vmem [shape: f32[1,32], index: 2, kind: input, shape index: {}]
  %s3 = inlined_call_operand.vmem [shape: f32[32,32], index: 3, kind: input, shape index: {}]
  %s4 = inlined_call_operand.vmem [shape: f32[1,32], index: 4, kind: input, shape index: {}]
  %s5 = inlined_call_operand.vmem [shape: f32[32,4], index: 5, kind: input, shape index: {}]
  %s6 = inlined_call_operand.vmem [shape: f32[1,4], index: 6, kind: input, shape index: {}]
  %s7 = inlined_call_operand.vmem [shape: f32[64,4], index: 7, kind: output, shape index: {}]
  %s8 = sld [smem:[#allocation0]]
  $region61: #{tpu_custom_call.1} parent=0
    _
  %s10 = ssub.s32 1, %s8
  %s11 = scalar_select 0, %s10, %s8
  loop: start=0, step=1, limit=4
  $region2: #{tpu_custom_call.1} parent=0 // loop_pre_header
    _
  $region3: #{tpu_custom_call.1} parent=0 // loop_header
    %s13 = sphi 0, %s17
    %p14 = scmp.ge.s32.totalorder %s13, 4
    %s23 = sphi 0, %s25
    %s26 = sphi 0, %s23
    %s27 = sphi 0, %s26
    %s43 = sphi 0, %s27
    %s47 = sphi 0, %s47
    %s49 = sphi 0, %s47
    %s50 = sphi 0, %s49
    %s64 = sphi 0, %s50
    %s68 = sphi 0, %s68
    %s70 = sphi 0, %s68
    %s71 = sphi 0, %s70
    %s85 = sphi 0, %s71
    %s89 = sphi 0, %s89
    %s91 = sphi 0, %s89
    %s92 = sphi 0, %s91
    %s106 = sphi 0, %s92
    %s110 = sphi 0, %s110
    %s112 = sphi 0, %s110
    %s113 = sphi 0, %s112
    %s127 = sphi 0, %s113
    %s131 = sphi 0, %s131
    %s133 = sphi 0, %s131
    %s134 = sphi 0, %s133
    %s148 = sphi 0, %s134
    %s152 = sphi 0, %s152
    %s154 = sphi 0, %s152
    %s155 = sphi 0, %s154
    %s169 = sphi 0, %s155
    %s175 = sphi 0, %s177
    %s178 = sphi 0, %s175
    %s179 = sphi 0, %s178
    %s195 = sphi 0, %s179
  $region4: #{tpu_custom_call.1} parent=0 // loop_header_branch
    %16 = sbr.rel (%p14) target = $region8
  $region5: #{tpu_custom_call.1} parent=0 // loop_body
    %s18 = ssub.s32 %s13, 1
    %s19 = ssub.s32 %s13, 2
    %s20 = sadd.s32 %s13, 1
    %s21 = ssub.s32 %s13, %s20
    %p22 = scmp.eq.s32.totalorder %s21, 0
    %s24 = sadd.s32 %s23, 1
    %s25 = scalar_select %p22, %s23, %s24
    %p28 = pneg %p22
    %p29 = scmp.eq.s32.totalorder %s13, 1
    %p30 = por %p28, %p29
    %p31 = scmp.ne.s32.totalorder %s23, %s26
    %p32 = scmp.eq.s32.totalorder %s13, 0
    %p33 = por %p31, %p32
    %p34 = scmp.ne.s32.totalorder %s23, %s26
    %p35 = scmp.eq.s32.totalorder %s18, 1
    %p36 = por %p34, %p35
    %p37 = scmp.ne.s32.totalorder %s26, %s27
    %p38 = scmp.eq.s32.totalorder %s18, 0
    %p39 = por %p37, %p38
    %p40 = scmp.ne.s32.totalorder %s26, %s27
    %p41 = scmp.eq.s32.totalorder %s19, 1
    %p42 = por %p40, %p41
    %p44 = scmp.ne.s32.totalorder %s27, %s43
    %p45 = scmp.eq.s32.totalorder %s19, 0
    %p46 = por %p44, %p45
    %s48 = sadd.s32 %s47, 1
    %p51 = scmp.eq.s32.totalorder %s13, 1
    %p52 = scmp.ne.s32.totalorder %s47, %s49
    %p53 = scmp.eq.s32.totalorder %s13, 0
    %p54 = por %p52, %p53
    %p55 = scmp.ne.s32.totalorder %s47, %s49
    %p56 = scmp.eq.s32.totalorder %s18, 1
    %p57 = por %p55, %p56
    %p58 = scmp.ne.s32.totalorder %s49, %s50
    %p59 = scmp.eq.s32.totalorder %s18, 0
    %p60 = por %p58, %p59
    %p61 = scmp.ne.s32.totalorder %s49, %s50
    %p62 = scmp.eq.s32.totalorder %s19, 1
    %p63 = por %p61, %p62
    %p65 = scmp.ne.s32.totalorder %s50, %s64
    %p66 = scmp.eq.s32.totalorder %s19, 0
    %p67 = por %p65, %p66
    %s69 = sadd.s32 %s68, 1
    %p72 = scmp.eq.s32.totalorder %s13, 1
    %p73 = scmp.ne.s32.totalorder %s68, %s70
    %p74 = scmp.eq.s32.totalorder %s13, 0
    %p75 = por %p73, %p74
    %p76 = scmp.ne.s32.totalorder %s68, %s70
    %p77 = scmp.eq.s32.totalorder %s18, 1
    %p78 = por %p76, %p77
    %p79 = scmp.ne.s32.totalorder %s70, %s71
    %p80 = scmp.eq.s32.totalorder %s18, 0
    %p81 = por %p79, %p80
    %p82 = scmp.ne.s32.totalorder %s70, %s71
    %p83 = scmp.eq.s32.totalorder %s19, 1
    %p84 = por %p82, %p83
    %p86 = scmp.ne.s32.totalorder %s71, %s85
    %p87 = scmp.eq.s32.totalorder %s19, 0
    %p88 = por %p86, %p87
    %s90 = sadd.s32 %s89, 1
    %p93 = scmp.eq.s32.totalorder %s13, 1
    %p94 = scmp.ne.s32.totalorder %s89, %s91
    %p95 = scmp.eq.s32.totalorder %s13, 0
    %p96 = por %p94, %p95
    %p97 = scmp.ne.s32.totalorder %s89, %s91
    %p98 = scmp.eq.s32.totalorder %s18, 1
    %p99 = por %p97, %p98
    %p100 = scmp.ne.s32.totalorder %s91, %s92
    %p101 = scmp.eq.s32.totalorder %s18, 0
    %p102 = por %p100, %p101
    %p103 = scmp.ne.s32.totalorder %s91, %s92
    %p104 = scmp.eq.s32.totalorder %s19, 1
    %p105 = por %p103, %p104
    %p107 = scmp.ne.s32.totalorder %s92, %s106
    %p108 = scmp.eq.s32.totalorder %s19, 0
    %p109 = por %p107, %p108
    %s111 = sadd.s32 %s110, 1
    %p114 = scmp.eq.s32.totalorder %s13, 1
    %p115 = scmp.ne.s32.totalorder %s110, %s112
    %p116 = scmp.eq.s32.totalorder %s13, 0
    %p117 = por %p115, %p116
    %p118 = scmp.ne.s32.totalorder %s110, %s112
    %p119 = scmp.eq.s32.totalorder %s18, 1
    %p120 = por %p118, %p119
    %p121 = scmp.ne.s32.totalorder %s112, %s113
    %p122 = scmp.eq.s32.totalorder %s18, 0
    %p123 = por %p121, %p122
    %p124 = scmp.ne.s32.totalorder %s112, %s113
    %p125 = scmp.eq.s32.totalorder %s19, 1
    %p126 = por %p124, %p125
    %p128 = scmp.ne.s32.totalorder %s113, %s127
    %p129 = scmp.eq.s32.totalorder %s19, 0
    %p130 = por %p128, %p129
    %s132 = sadd.s32 %s131, 1
    %p135 = scmp.eq.s32.totalorder %s13, 1
    %p136 = scmp.ne.s32.totalorder %s131, %s133
    %p137 = scmp.eq.s32.totalorder %s13, 0
    %p138 = por %p136, %p137
    %p139 = scmp.ne.s32.totalorder %s131, %s133
    %p140 = scmp.eq.s32.totalorder %s18, 1
    %p141 = por %p139, %p140
    %p142 = scmp.ne.s32.totalorder %s133, %s134
    %p143 = scmp.eq.s32.totalorder %s18, 0
    %p144 = por %p142, %p143
    %p145 = scmp.ne.s32.totalorder %s133, %s134
    %p146 = scmp.eq.s32.totalorder %s19, 1
    %p147 = por %p145, %p146
    %p149 = scmp.ne.s32.totalorder %s134, %s148
    %p150 = scmp.eq.s32.totalorder %s19, 0
    %p151 = por %p149, %p150
    %s153 = sadd.s32 %s152, 1
    %p156 = scmp.eq.s32.totalorder %s13, 1
    %p157 = scmp.ne.s32.totalorder %s152, %s154
    %p158 = scmp.eq.s32.totalorder %s13, 0
    %p159 = por %p157, %p158
    %p160 = scmp.ne.s32.totalorder %s152, %s154
    %p161 = scmp.eq.s32.totalorder %s18, 1
    %p162 = por %p160, %p161
    %p163 = scmp.ne.s32.totalorder %s154, %s155
    %p164 = scmp.eq.s32.totalorder %s18, 0
    %p165 = por %p163, %p164
    %p166 = scmp.ne.s32.totalorder %s154, %s155
    %p167 = scmp.eq.s32.totalorder %s19, 1
    %p168 = por %p166, %p167
    %p170 = scmp.ne.s32.totalorder %s155, %s169
    %p171 = scmp.eq.s32.totalorder %s19, 0
    %p172 = por %p170, %p171
    %s173 = ssub.s32 %s13, %s20
    %p174 = scmp.eq.s32.totalorder %s173, 0
    %s176 = sadd.s32 %s175, 1
    %s177 = scalar_select %p174, %s175, %s176
    %p180 = pneg %p174
    %p181 = scmp.eq.s32.totalorder %s13, 1
    %p182 = por %p180, %p181
    %p183 = scmp.ne.s32.totalorder %s175, %s178
    %p184 = scmp.eq.s32.totalorder %s13, 0
    %p185 = por %p183, %p184
    %p186 = scmp.ne.s32.totalorder %s175, %s178
    %p187 = scmp.eq.s32.totalorder %s18, 1
    %p188 = por %p186, %p187
    %p189 = scmp.ne.s32.totalorder %s178, %s179
    %p190 = scmp.eq.s32.totalorder %s18, 0
    %p191 = por %p189, %p190
    %p192 = scmp.ne.s32.totalorder %s178, %s179
    %p193 = scmp.eq.s32.totalorder %s19, 1
    %p194 = por %p192, %p193
    %p196 = scmp.ne.s32.totalorder %s179, %s195
    %p197 = scmp.eq.s32.totalorder %s19, 0
    %p198 = por %p196, %p197
    %p199 = scmp.le.s32.totalorder 1, %s13
    %p200 = scmp.lt.s32.totalorder %s13, 3
    %p201 = pnand %p199, %p200
    %p202 = pneg %p201
    // Predicated region
    $region9: #{tpu_custom_call.1} parent=5 // pred_check
      _
    $region10: #{tpu_custom_call.1} parent=5 // pred_check_branch
      %204 = sbr.rel (%p201) target = $region12
    $region11: #{tpu_custom_call.1} parent=5 // pred_region
      %s205 = ssub.s32 %s13, 1
      // Predicated region
      $region13: #{tpu_custom_call.1} parent=11 // pred_check
        %p206 = pneg %p60
      $region14: #{tpu_custom_call.1} parent=11 // pred_check_branch
        %208 = sbr.rel (%p206) target = $region16
      $region15: #{tpu_custom_call.1} parent=11 // pred_region
        _
      $region16: #{tpu_custom_call.1} parent=11 // pred_fallthru
        _
      // Predicated region
      $region17: #{tpu_custom_call.1} parent=11 // pred_check
        %p209 = pneg %p81
      $region18: #{tpu_custom_call.1} parent=11 // pred_check_branch
        %211 = sbr.rel (%p209) target = $region20
      $region19: #{tpu_custom_call.1} parent=11 // pred_region
        _
      $region20: #{tpu_custom_call.1} parent=11 // pred_fallthru
        _
      // Predicated region
      $region21: #{tpu_custom_call.1} parent=11 // pred_check
        %p212 = pneg %p102
      $region22: #{tpu_custom_call.1} parent=11 // pred_check_branch
        %214 = sbr.rel (%p212) target = $region24
      $region23: #{tpu_custom_call.1} parent=11 // pred_region
        _
      $region24: #{tpu_custom_call.1} parent=11 // pred_fallthru
        _
      // Predicated region
      $region25: #{tpu_custom_call.1} parent=11 // pred_check
        %p215 = pneg %p123
      $region26: #{tpu_custom_call.1} parent=11 // pred_check_branch
        %217 = sbr.rel (%p215) target = $region28
      $region27: #{tpu_custom_call.1} parent=11 // pred_region
        _
      $region28: #{tpu_custom_call.1} parent=11 // pred_fallthru
        _
      // Predicated region
      $region29: #{tpu_custom_call.1} parent=11 // pred_check
        %p218 = pneg %p144
      $region30: #{tpu_custom_call.1} parent=11 // pred_check_branch
        %220 = sbr.rel (%p218) target = $region32
      $region31: #{tpu_custom_call.1} parent=11 // pred_region
        _
      $region32: #{tpu_custom_call.1} parent=11 // pred_fallthru
        _
      // Predicated region
      $region33: #{tpu_custom_call.1} parent=11 // pred_check
        %p221 = pneg %p165
      $region34: #{tpu_custom_call.1} parent=11 // pred_check_branch
        %223 = sbr.rel (%p221) target = $region36
      $region35: #{tpu_custom_call.1} parent=11 // pred_region
        _
      $region36: #{tpu_custom_call.1} parent=11 // pred_fallthru
        _
    $region12: #{tpu_custom_call.1} parent=5 // pred_fallthru
      _
    %p224 = scmp.lt.s32.totalorder %s13, 2
    // Predicated region
    $region37: #{tpu_custom_call.1} parent=5 // pred_check
      %p225 = pneg %p224
    $region38: #{tpu_custom_call.1} parent=5 // pred_check_branch
      %227 = sbr.rel (%p225) target = $region40
    $region39: #{tpu_custom_call.1} parent=5 // pred_region
      // Predicated region
      $region41: #{tpu_custom_call.1} parent=39 // pred_check
        %p228 = pneg %p33
      $region42: #{tpu_custom_call.1} parent=39 // pred_check_branch
        %230 = sbr.rel (%p228) target = $region44
      $region43: #{tpu_custom_call.1} parent=39 // pred_region
        %s231 = smul.u32 4, %s13
        %p232 = scmp.lt.s32.totalorder %s231, 7
        %s233 = scalar_select %p232, %s231, 7
        %s234 = smul.addr %s233, 8
        %s235 = scalar_lea.vmem %s0, %s234
        %s236 = smul.u32 4, %s13
      $region44: #{tpu_custom_call.1} parent=39 // pred_fallthru
        _
    $region40: #{tpu_custom_call.1} parent=5 // pred_fallthru
      _
    %p237 = scmp.le.s32.totalorder 1, %s13
    %p238 = scmp.lt.s32.totalorder %s13, 3
    %p239 = pnand %p237, %p238
    %p240 = pneg %p239
    // Predicated region
    $region45: #{tpu_custom_call.1} parent=5 // pred_check
      _
    $region46: #{tpu_custom_call.1} parent=5 // pred_check_branch
      %242 = sbr.rel (%p239) target = $region48
    $region47: #{tpu_custom_call.1} parent=5 // pred_region
      %s243 = ssub.s32 %s13, 1
      %s244 = smul.u32 4, %s18
      %p245 = scmp.lt.s32.totalorder %s244, 7
      %s246 = scalar_select %p245, %s244, 7
      %s247 = smul.addr %s246, 8
      %s248 = scalar_lea.vmem %s0, %s247
      %p249 = pneg %p39
      %p250 = pneg %p36
      %p251 = pneg %p60
      %p252 = pneg %p57
      %p253 = pneg %p81
      %p254 = pneg %p78
      %p255 = pneg %p102
      %p256 = pneg %p99
      %p257 = pneg %p123
      %p258 = pneg %p120
      %p259 = pneg %p144
      %p260 = pneg %p141
      %p261 = pneg %p165
      %p262 = pneg %p162
      %p263 = pneg %p191
      %p264 = pneg %p188
      %s265 = smul.u32 4, %s18
      %p266 = scmp.lt.s32.totalorder %s265, 7
      %s267 = scalar_select %p266, %s265, 7
      %s268 = smul.addr %s267, 8
      %s269 = scalar_lea.vmem %s7, %s268
      %s270 = smul.u32 4, %s18
      %p271 = scmp.lt.s32.totalorder %s270, 7
      %s272 = scalar_select %p271, %s270, 7
      %s273 = smul.addr %s272, 8
      %s274 = scalar_lea.vmem %s0, %s273
      %s275 = smul.u32 4, %s18
      %s276 = smul.u32 4, %s18
      %p277 = scmp.lt.s32.totalorder %s276, 7
      %s278 = scalar_select %p277, %s276, 7
      %s279 = smul.addr %s278, 8
      %s280 = scalar_lea.vmem %s7, %s279
      %s281 = smul.u32 4, %s18
      %v282 = vld [vmem:[%s274] sm:$0xff]
      %v283 = vld [vmem:[%s274 + $0x8] sm:$0xff]
      %v284 = vld [vmem:[%s274 + $0x10] sm:$0xff]
      %v285 = vld [vmem:[%s274 + $0x18] sm:$0xff]
      %v286 = vld [vmem:[%s1] sm:$0xff]
      %v287 = vld [vmem:[%s2] sm:$0x1]
      %v289 = vperm.slane %v287, 0
      %vm291 = vcmask 64512
      %v293 = vsel %vm291, %v282, 0
      %v296 = vsel %vm291, %v283, 0
      %v299 = vsel %vm291, %v284, 0
      %v302 = vsel %vm291, %v285, 0
      %304 = vmatpush.msra.mxu0 0.0
      %305 = vmatpush.msra.mxu0 0.0
      %306 = vmatpush.msra.mxu0 0.0
      %307 = vmatpush.msra.mxu0 0.0
      %308 = vmatpush.msra.mxu0 0.0
      %309 = vmatpush.msra.mxu0 0.0
      %310 = vmatpush.msra.mxu0 0.0
      %311 = vmatpush.msra.mxu0 0.0
      %312 = vmatpush.msra.mxu0 0.0
      %313 = vmatpush.msra.mxu0 0.0
      %314 = vmatpush.msra.mxu0 0.0
      %315 = vmatpush.msra.mxu0 0.0
      %316 = vmatpush.msra.mxu0 0.0
      %317 = vmatpush.msra.mxu0 0.0
      %318 = vmatpush.msra.mxu0 0.0
      %319 = vmatpush.msra.mxu0 %v286
      %320 = vmatmul.f32.gmra.mxu0 %v293
      %v321 = vpop.f32.mrf.mxu0
      %v322 = vadd.f32 %v289, %v321
      %323 = vmatmul.f32.gmra.mxu0 %v296
      %v324 = vpop.f32.mrf.mxu0
      %v325 = vadd.f32 %v289, %v324
      %326 = vmatmul.f32.gmra.mxu0 %v299
      %v327 = vpop.f32.mrf.mxu0
      %v328 = vadd.f32 %v289, %v327
      %329 = vmatmul.f32.gmra.mxu0 %v302
      %v330 = vpop.f32.mrf.mxu0
      %v331 = vadd.f32 %v289, %v330
      %332 = vdwg.mxu0
      %v333 = vmax.f32 %v322, 0.0
      %v334 = vmax.f32 %v325, 0.0
      %v335 = vmax.f32 %v328, 0.0
      %v336 = vmax.f32 %v331, 0.0
      %v337 = vld [vmem:[%s3] sm:$0xff]
      %v338 = vld [vmem:[%s3 + $0x8] sm:$0xff]
      %v339 = vld [vmem:[%s3 + $0x10] sm:$0xff]
      %v340 = vld [vmem:[%s3 + $0x18] sm:$0xff]
      %v341 = vld [vmem:[%s4] sm:$0x1]
      %v343 = vperm.slane %v341, 0
      %vm345 = vcmask 261120
      %v347 = vsel %vm345, %v333, 0
      %v350 = vsel %vm345, %v334, 0
      %v353 = vsel %vm345, %v335, 0
      %v356 = vsel %vm345, %v336, 0
      %358 = vmatpush.msra.mxu0 0.0
      %359 = vmatpush.msra.mxu0 0.0
      %360 = vmatpush.msra.mxu0 0.0
      %361 = vmatpush.msra.mxu0 0.0
      %362 = vmatpush.msra.mxu0 0.0
      %363 = vmatpush.msra.mxu0 0.0
      %364 = vmatpush.msra.mxu0 0.0
      %365 = vmatpush.msra.mxu0 0.0
      %366 = vmatpush.msra.mxu0 0.0
      %367 = vmatpush.msra.mxu0 0.0
      %368 = vmatpush.msra.mxu0 0.0
      %369 = vmatpush.msra.mxu0 0.0
      %370 = vmatpush.msra.mxu0 %v340
      %371 = vmatpush.msra.mxu0 %v339
      %372 = vmatpush.msra.mxu0 %v338
      %373 = vmatpush.msra.mxu0 %v337
      %374 = vmatmul.f32.gmra.mxu0 %v347
      %v375 = vpop.f32.mrf.mxu0
      %v376 = vadd.f32 %v343, %v375
      %377 = vmatmul.f32.gmra.mxu0 %v350
      %v378 = vpop.f32.mrf.mxu0
      %v379 = vadd.f32 %v343, %v378
      %380 = vmatmul.f32.gmra.mxu0 %v353
      %v381 = vpop.f32.mrf.mxu0
      %v382 = vadd.f32 %v343, %v381
      %383 = vmatmul.f32.gmra.mxu0 %v356
      %v384 = vpop.f32.mrf.mxu0
      %v385 = vadd.f32 %v343, %v384
      %386 = vdwg.mxu0
      %v387 = vmax.f32 %v376, 0.0
      %v388 = vmax.f32 %v379, 0.0
      %v389 = vmax.f32 %v382, 0.0
      %v390 = vmax.f32 %v385, 0.0
      %v391 = vld [vmem:[%s5] sm:$0xff]
      %v392 = vld [vmem:[%s5 + $0x8] sm:$0xff]
      %v393 = vld [vmem:[%s5 + $0x10] sm:$0xff]
      %v394 = vld [vmem:[%s5 + $0x18] sm:$0xff]
      %v395 = vld [vmem:[%s6] sm:$0x1]
      %v397 = vperm.slane %v395, 0
      %v400 = vsel %vm345, %v387, 0
      %v403 = vsel %vm345, %v388, 0
      %v406 = vsel %vm345, %v389, 0
      %v409 = vsel %vm345, %v390, 0
      %411 = vmatpush.msra.mxu0 0.0
      %412 = vmatpush.msra.mxu0 0.0
      %413 = vmatpush.msra.mxu0 0.0
      %414 = vmatpush.msra.mxu0 0.0
      %415 = vmatpush.msra.mxu0 0.0
      %416 = vmatpush.msra.mxu0 0.0
      %417 = vmatpush.msra.mxu0 0.0
      %418 = vmatpush.msra.mxu0 0.0
      %419 = vmatpush.msra.mxu0 0.0
      %420 = vmatpush.msra.mxu0 0.0
      %421 = vmatpush.msra.mxu0 0.0
      %422 = vmatpush.msra.mxu0 0.0
      %423 = vmatpush.msra.mxu0 %v394
      %424 = vmatpush.msra.mxu0 %v393
      %425 = vmatpush.msra.mxu0 %v392
      %426 = vmatpush.msra.mxu0 %v391
      %427 = vmatmul.f32.gmra.mxu0 %v400
      %v428 = vpop.f32.mrf.mxu0
      %v429 = vadd.f32 %v397, %v428
      %430 = vmatmul.f32.gmra.mxu0 %v403
      %v431 = vpop.f32.mrf.mxu0
      %v432 = vadd.f32 %v397, %v431
      %433 = vmatmul.f32.gmra.mxu0 %v406
      %v434 = vpop.f32.mrf.mxu0
      %v435 = vadd.f32 %v397, %v434
      %436 = vmatmul.f32.gmra.mxu0 %v409
      %v437 = vpop.f32.mrf.mxu0
      %v438 = vadd.f32 %v397, %v437
      %439 = vdwg.mxu0
      %v440 = vtanh.pop %v429
      %v441 = vtanh.pop %v432
      %v442 = vtanh.pop %v435
      %v443 = vtanh.pop %v438
      %vm444 = vcmask 31744
      %445 = vst.msk [vmem:[%s280] sm:$0xff] %vm444, %v440
      %446 = vst.msk [vmem:[%s280 + $0x8] sm:$0xff] %vm444, %v441
      %447 = vst.msk [vmem:[%s280 + $0x10] sm:$0xff] %vm444, %v442
      %448 = vst.msk [vmem:[%s280 + $0x18] sm:$0xff] %vm444, %v443
      %s449 = smul.u32 4, %s18
      %p450 = scmp.lt.s32.totalorder %s449, 7
      %s451 = scalar_select %p450, %s449, 7
      %s452 = smul.addr %s451, 8
      %s453 = scalar_lea.vmem %s7, %s452
      // Predicated region
      $region49: #{tpu_custom_call.1} parent=47 // pred_check
        %p454 = pneg %p188
      $region50: #{tpu_custom_call.1} parent=47 // pred_check_branch
        %456 = sbr.rel (%p454) target = $region52
      $region51: #{tpu_custom_call.1} parent=47 // pred_region
        %s457 = smul.u32 4, %s18
      $region52: #{tpu_custom_call.1} parent=47 // pred_fallthru
        _
    $region48: #{tpu_custom_call.1} parent=5 // pred_fallthru
      _
    %p458 = scmp.le.s32.totalorder 2, %s13
    // Predicated region
    $region53: #{tpu_custom_call.1} parent=5 // pred_check
      %p459 = pneg %p458
    $region54: #{tpu_custom_call.1} parent=5 // pred_check_branch
      %461 = sbr.rel (%p459) target = $region56
    $region55: #{tpu_custom_call.1} parent=5 // pred_region
      %s462 = ssub.s32 %s13, 2
      // Predicated region
      $region57: #{tpu_custom_call.1} parent=55 // pred_check
        %p463 = pneg %p194
      $region58: #{tpu_custom_call.1} parent=55 // pred_check_branch
        %465 = sbr.rel (%p463) target = $region60
      $region59: #{tpu_custom_call.1} parent=55 // pred_region
        %s466 = smul.u32 4, %s19
        %p467 = scmp.lt.s32.totalorder %s466, 7
        %s468 = scalar_select %p467, %s466, 7
        %s469 = smul.addr %s468, 8
        %s470 = scalar_lea.vmem %s7, %s469
      $region60: #{tpu_custom_call.1} parent=55 // pred_fallthru
        _
    $region56: #{tpu_custom_call.1} parent=5 // pred_fallthru
      _
  $region6: #{tpu_custom_call.1} parent=0 // loop_footer
    %s17 = sadd.s32 1, %s13
  $region7: #{tpu_custom_call.1} parent=0 // loop_footer_branch
    %12 = sbr.rel target = $region3
  $region8: #{tpu_custom_call.1} parent=0 // loop_exit
    _

</llo_original>
